<compile_context>
chip_gen: v6e
topology: v6e:2x2x1
jax: 0.10.0
libtpu: 0.0.40
codegen_flags: <defaults>
</compile_context>

<pallas_src>
import functools

import jax
import jax.numpy as jnp
from jax.experimental import pallas as pl
from jax.experimental.pallas import tpu as pltpu

_BN_EPS = 1e-5
_LANE = 128


def _ceil_to(x, m):
    return ((x + m - 1) // m) * m


# ----------------------------------------------------------------------------
# Kernel
# ----------------------------------------------------------------------------
def _generator_kernel(x_ref, p_ref, out_ref, slab, *, layout):
    """Fully fused Generator forward.

    x_ref  : (N, e_pad)            zero-padded input noise
    p_ref  : (rows, C)             all parameters, packed lane-dense
    out_ref: (N, dout_pad)         zero-padded output
    slab   : (N, total_pad) VMEM   concat slab [h_L | ... | h_1 | x0], each
                                   segment 128-lane aligned, written once.
    """
    e_pad = layout["e_pad"]
    total = layout["total_pad"]
    d_pads = layout["d_pads"]
    n_blocks = len(d_pads)

    # Input noise goes at the tail of the slab (written exactly once).
    x0_off = total - e_pad
    slab[:, x0_off:] = x_ref[...]

    off = x0_off
    for k in range(n_blocks):
        d_pad = d_pads[k]
        in_pad = total - off
        w_off = layout["w_offs"][k]
        gb_off = layout["gb_offs"][k]

        # Padded block weight and (gamma, beta) rows — static, aligned slices.
        w = p_ref[w_off:w_off + in_pad, 0:d_pad]          # (in_pad, d_pad)
        gb = p_ref[gb_off:gb_off + 8, 0:d_pad]            # row0=gamma, row1=beta

        # Current activation = contiguous, lane-aligned suffix of the slab.
        x_cur = slab[:, off:total]                        # (N, in_pad)

        # Linear (MXU, f32 accumulate).  Bias omitted: cancelled by BN mean.
        h = jnp.dot(x_cur, w, preferred_element_type=jnp.float32)

        # BatchNorm1d (training mode: full-batch mean, biased variance),
        # gamma folded into the inverse std.
        mean = jnp.mean(h, axis=0, keepdims=True)         # (1, d_pad)
        ctr = h - mean
        var = jnp.mean(ctr * ctr, axis=0, keepdims=True)
        scale = gb[0:1, :] * jax.lax.rsqrt(var + _BN_EPS)

        # Affine + ReLU.  Padded columns stay exactly zero (w/gamma/beta pads=0).
        h = jnp.maximum(ctr * scale + gb[1:2, :], 0.0)

        # torch.cat([h, x], dim=1): h goes in front of the previous columns.
        off -= d_pad
        slab[:, off:off + d_pad] = h

    # Final Linear over the full concatenated slab.
    fw = p_ref[layout["fw_off"]:layout["fw_off"] + total, 0:layout["dout_pad"]]
    fb = p_ref[layout["fb_off"]:layout["fb_off"] + 8, 0:layout["dout_pad"]]
    out_ref[...] = (
        jnp.dot(slab[...], fw, preferred_element_type=jnp.float32) + fb[0:1, :]
    )


def _full_spec(shape):
    # Whole-array block (everything here fits comfortably in VMEM).
    return pl.BlockSpec(shape, lambda: (0,) * len(shape))


# ----------------------------------------------------------------------------
# Parameter packing (one lane-dense array, 128-aligned segments)
# ----------------------------------------------------------------------------
def pack_generator_params(params, embedding_dim):
    """Pack all Generator parameters into one lane-dense (rows, C) array.

    Every feature dimension is zero-padded to a multiple of 128, weight rows
    are re-laid-out to match the padded concat slab, and per-block Linear
    biases are dropped (exactly cancelled by BatchNorm's mean subtraction).
    """
    blocks = params["residuals"]
    d = [int(p["w"].shape[1]) for p in blocks]
    d_pad = [_ceil_to(x, _LANE) for x in d]
    e_pad = _ceil_to(embedding_dim, _LANE)
    data_dim = int(params["final_w"].shape[1])
    dout_pad = _ceil_to(data_dim, _LANE)
    total_pad = e_pad + sum(d_pad)
    ncols = max(d_pad + [dout_pad])

    def pad_weight(w_raw, seg_sizes, seg_pads, out_dim, out_pad):
        # Re-lay-out weight rows segment by segment to match the padded slab.
        rows, r = [], 0
        for s, sp in zip(seg_sizes, seg_pads):
            seg = w_raw[r:r + s]                                   # (s, out_dim)
            seg = jnp.pad(seg, ((0, sp - s), (0, out_pad - out_dim)))
            rows.append(seg)
            r += s
        return jnp.concatenate(rows, axis=0)                       # (sum sp, out_pad)

    pieces, w_offs, gb_offs = [], [], []
    row = 0
    for k, p in enumerate(blocks):
        # Slab suffix seen by block k: [h_{k-1}, ..., h_0, x0]
        seg_sizes = list(reversed(d[:k])) + [embedding_dim]
        seg_pads = list(reversed(d_pad[:k])) + [e_pad]
        in_pad_k = sum(seg_pads)

        w_p = pad_weight(p["w"], seg_sizes, seg_pads, d[k], d_pad[k])
        w_p = jnp.pad(w_p, ((0, 0), (0, ncols - d_pad[k])))
        w_offs.append(row)
        pieces.append(w_p)
        row += in_pad_k

        # NOTE: p["b"] (Linear bias) intentionally not packed — BN cancels it.
        gb = jnp.zeros((8, ncols), jnp.float32)
        gb = gb.at[0, :d[k]].set(p["gamma"][0])
        gb = gb.at[1, :d[k]].set(p["beta"][0])
        gb_offs.append(row)
        pieces.append(gb)
        row += 8

    seg_sizes = list(reversed(d)) + [embedding_dim]
    seg_pads = list(reversed(d_pad)) + [e_pad]
    fw_p = pad_weight(params["final_w"], seg_sizes, seg_pads, data_dim, dout_pad)
    fw_p = jnp.pad(fw_p, ((0, 0), (0, ncols - dout_pad)))
    fw_off = row
    pieces.append(fw_p)
    row += total_pad

    fb = jnp.zeros((8, ncols), jnp.float32).at[0, :data_dim].set(params["final_b"][0])
    fb_off = row
    pieces.append(fb)
    row += 8

    packed = jnp.concatenate(pieces, axis=0)
    layout = dict(
        e_pad=e_pad, d_pads=tuple(d_pad), total_pad=total_pad,
        dout_pad=dout_pad, data_dim=data_dim,
        w_offs=tuple(w_offs), gb_offs=tuple(gb_offs),
        fw_off=fw_off, fb_off=fb_off,
        n_rows=row, n_cols=ncols,
    )
    return packed, layout


def _vmem_limit_bytes(n, layout):
    f = 4  # f32
    slab = n * layout["total_pad"] * f
    x_in = n * layout["e_pad"] * f
    pkd = layout["n_rows"] * layout["n_cols"] * f
    out = n * layout["dout_pad"] * f
    need = slab + 2 * (x_in + pkd + out)          # double-buffered I/O
    return int(min(max(need + (4 << 20), 16 << 20), 100 << 20))


# ----------------------------------------------------------------------------
# Wrapper
# ----------------------------------------------------------------------------
def generator_forward(params, x):
    """Pallas-backed forward pass of the CTGAN Generator (single fused kernel)."""
    n, embedding_dim = x.shape
    packed, layout = pack_generator_params(params, embedding_dim)

    x_pad = jnp.pad(x, ((0, 0), (0, layout["e_pad"] - embedding_dim)))

    kernel = functools.partial(_generator_kernel, layout=layout)

    out_pad = pl.pallas_call(
        kernel,
        out_shape=jax.ShapeDtypeStruct((n, layout["dout_pad"]), jnp.float32),
        in_specs=[_full_spec(x_pad.shape), _full_spec(packed.shape)],
        out_specs=_full_spec((n, layout["dout_pad"])),
        # VMEM-resident, 128-lane-aligned concat slab.
        scratch_shapes=[pltpu.VMEM((n, layout["total_pad"]), jnp.float32)],
        compiler_params=pltpu.CompilerParams(
            vmem_limit_bytes=_vmem_limit_bytes(n, layout)),
    )(x_pad, packed)

    return out_pad[:, :layout["data_dim"]]


# ----------------------------------------------------------------------------
# Parameter init (same shapes / semantics as the PyTorch module) + reference
# ----------------------------------------------------------------------------
def init_generator_params(key, embedding_dim, generator_dim, data_dim):
    params = {"residuals": []}
    dim = embedding_dim
    for item in generator_dim:
        key, kw, kb = jax.random.split(key, 3)
        bound = 1.0 / (dim ** 0.5)
        w = jax.random.uniform(kw, (dim, item), jnp.float32, -bound, bound)  # (i, o)
        b = jax.random.uniform(kb, (1, item), jnp.float32, -bound, bound)
        params["residuals"].append({
            "w": w, "b": b,
            "gamma": jnp.ones((1, item), jnp.float32),
            "beta": jnp.zeros((1, item), jnp.float32),
        })
        dim += item
    key, kw, kb = jax.random.split(key, 3)
    bound = 1.0 / (dim ** 0.5)
    params["final_w"] = jax.random.uniform(
        kw, (dim, data_dim), jnp.float32, -bound, bound)
    params["final_b"] = jax.random.uniform(
        kb, (1, data_dim), jnp.float32, -bound, bound)
    return params


def _reference_forward(params, x):
    """Pure-JAX reference (uses the Linear bias; kernel's bias drop is exact)."""
    for p in params["residuals"]:
        h = x @ p["w"] + p["b"]
        mean = jnp.mean(h, axis=0, keepdims=True)
        var = jnp.mean((h - mean) ** 2, axis=0, keepdims=True)
        h = (h - mean) / jnp.sqrt(var + _BN_EPS) * p["gamma"] + p["beta"]
        h = jnp.maximum(h, 0.0)
        x = jnp.concatenate([h, x], axis=1)
    return x @ params["final_w"] + params["final_b"]


if __name__ == "__main__":
    embedding_dim = 32
    generator_dim = (32, 32)
    data_dim = 16
    batch = 8

    key = jax.random.PRNGKey(0)
    key, k_in = jax.random.split(key)
    params = init_generator_params(key, embedding_dim, generator_dim, data_dim)
    noise = jax.random.normal(k_in, (batch, embedding_dim), jnp.float32)

    out = generator_forward(params, noise)
    out = jax.block_until_ready(out)

    ref = _reference_forward(params, noise)
    assert out.shape == (batch, data_dim)
    assert jnp.allclose(out, ref, atol=1e-4, rtol=1e-4)

    print("KERNEL_OK")
</pallas_src>

<mosaic_0001>
module attributes {stable_mosaic.version = 11 : i64} {
  func.func @_generator_kernel(%arg0: memref<8x128xf32, #tpu.memory_space<vmem>>, %arg1: memref<792x128xf32, #tpu.memory_space<vmem>>, %arg2: memref<8x128xf32, #tpu.memory_space<vmem>>, %arg3: memref<8x384xf32, #tpu.memory_space<vmem>>) attributes {dimension_semantics = [], scalar_prefetch = 0 : i64, scratch_operands = 1 : i64, tpu.core_type = #tpu.core_type<tc>} {
    %c0 = arith.constant 0 : index
    %c0_0 = arith.constant 0 : index
    %0 = vector.load %arg0[%c0, %c0_0] : memref<8x128xf32, #tpu.memory_space<vmem>>, vector<8x128xf32>
    %c0_1 = arith.constant 0 : index
    %c256 = arith.constant 256 : index
    %1 = vector.load %arg3[%c0_1, %c256] : memref<8x384xf32, #tpu.memory_space<vmem>>, vector<8x128xf32>
    tpu.vector_store %arg3[%c0_1, %c256], %0 {strides = array<i32>} : memref<8x384xf32, #tpu.memory_space<vmem>>, vector<8x128xf32>,
    %c0_2 = arith.constant 0 : index
    %c0_3 = arith.constant 0 : index
    %2 = vector.load %arg1[%c0_2, %c0_3] : memref<792x128xf32, #tpu.memory_space<vmem>>, vector<128x128xf32>
    %c128 = arith.constant 128 : index
    %c0_4 = arith.constant 0 : index
    %3 = vector.load %arg1[%c128, %c0_4] : memref<792x128xf32, #tpu.memory_space<vmem>>, vector<8x128xf32>
    %c0_5 = arith.constant 0 : index
    %c256_6 = arith.constant 256 : index
    %4 = vector.load %arg3[%c0_5, %c256_6] : memref<8x384xf32, #tpu.memory_space<vmem>>, vector<8x128xf32>
    %cst = arith.constant dense<0.000000e+00> : vector<8x128xf32>
    %5 = tpu.matmul %4, %2, %cst {dimension_numbers = #tpu.dot_dimension_numbers<[1], [0], [0], [1], [0, 0, 1, 1], [], []>} : vector<8x128xf32>, vector<128x128xf32>, vector<8x128xf32> -> vector<8x128xf32>
    %cst_7 = arith.constant dense<0.000000e+00> : vector<128xf32>
    %6 = vector.multi_reduction <add>, %5, %cst_7 [0] : vector<8x128xf32> to vector<128xf32>
    %7 = vector.shape_cast %6 : vector<128xf32> to vector<1x128xf32>
    %cst_8 = arith.constant 8.000000e+00 : f32
    %8 = vector.broadcast %cst_8 : f32 to vector<1x128xf32>
    %9 = arith.divf %7, %8 : vector<1x128xf32>
    %10 = vector.broadcast %9 : vector<1x128xf32> to vector<8x128xf32>
    %11 = arith.subf %5, %10 : vector<8x128xf32>
    %12 = arith.mulf %11, %11 : vector<8x128xf32>
    %cst_9 = arith.constant dense<0.000000e+00> : vector<128xf32>
    %13 = vector.multi_reduction <add>, %12, %cst_9 [0] : vector<8x128xf32> to vector<128xf32>
    %14 = vector.shape_cast %13 : vector<128xf32> to vector<1x128xf32>
    %cst_10 = arith.constant 8.000000e+00 : f32
    %15 = vector.broadcast %cst_10 : f32 to vector<1x128xf32>
    %16 = arith.divf %14, %15 : vector<1x128xf32>
    %17 = vector.extract_strided_slice %3 {offsets = [0, 0], sizes = [1, 128], strides = [1, 1]} : vector<8x128xf32> to vector<1x128xf32>
    %cst_11 = arith.constant 9.99999974E-6 : f32
    %18 = vector.broadcast %cst_11 : f32 to vector<1x128xf32>
    %19 = arith.addf %16, %18 : vector<1x128xf32>
    %20 = math.rsqrt %19 : vector<1x128xf32>
    %21 = arith.mulf %17, %20 : vector<1x128xf32>
    %22 = vector.broadcast %21 : vector<1x128xf32> to vector<8x128xf32>
    %23 = arith.mulf %11, %22 : vector<8x128xf32>
    %24 = vector.extract_strided_slice %3 {offsets = [1, 0], sizes = [1, 128], strides = [1, 1]} : vector<8x128xf32> to vector<1x128xf32>
    %25 = vector.broadcast %24 : vector<1x128xf32> to vector<8x128xf32>
    %26 = arith.addf %23, %25 : vector<8x128xf32>
    %cst_12 = arith.constant 0.000000e+00 : f32
    %27 = vector.broadcast %cst_12 : f32 to vector<8x128xf32>
    %28 = arith.maximumf %26, %27 : vector<8x128xf32>
    %c0_13 = arith.constant 0 : index
    %c128_14 = arith.constant 128 : index
    %29 = vector.load %arg3[%c0_13, %c128_14] : memref<8x384xf32, #tpu.memory_space<vmem>>, vector<8x128xf32>
    tpu.vector_store %arg3[%c0_13, %c128_14], %28 {strides = array<i32>} : memref<8x384xf32, #tpu.memory_space<vmem>>, vector<8x128xf32>,
    %c136 = arith.constant 136 : index
    %c0_15 = arith.constant 0 : index
    %30 = vector.load %arg1[%c136, %c0_15] : memref<792x128xf32, #tpu.memory_space<vmem>>, vector<256x128xf32>
    %c392 = arith.constant 392 : index
    %c0_16 = arith.constant 0 : index
    %31 = vector.load %arg1[%c392, %c0_16] : memref<792x128xf32, #tpu.memory_space<vmem>>, vector<8x128xf32>
    %c0_17 = arith.constant 0 : index
    %c128_18 = arith.constant 128 : index
    %32 = vector.load %arg3[%c0_17, %c128_18] : memref<8x384xf32, #tpu.memory_space<vmem>>, vector<8x256xf32>
    %cst_19 = arith.constant dense<0.000000e+00> : vector<8x128xf32>
    %33 = tpu.matmul %32, %30, %cst_19 {dimension_numbers = #tpu.dot_dimension_numbers<[1], [0], [0], [1], [0, 0, 1, 1], [], []>} : vector<8x256xf32>, vector<256x128xf32>, vector<8x128xf32> -> vector<8x128xf32>
    %cst_20 = arith.constant dense<0.000000e+00> : vector<128xf32>
    %34 = vector.multi_reduction <add>, %33, %cst_20 [0] : vector<8x128xf32> to vector<128xf32>
    %35 = vector.shape_cast %34 : vector<128xf32> to vector<1x128xf32>
    %cst_21 = arith.constant 8.000000e+00 : f32
    %36 = vector.broadcast %cst_21 : f32 to vector<1x128xf32>
    %37 = arith.divf %35, %36 : vector<1x128xf32>
    %38 = vector.broadcast %37 : vector<1x128xf32> to vector<8x128xf32>
    %39 = arith.subf %33, %38 : vector<8x128xf32>
    %40 = arith.mulf %39, %39 : vector<8x128xf32>
    %cst_22 = arith.constant dense<0.000000e+00> : vector<128xf32>
    %41 = vector.multi_reduction <add>, %40, %cst_22 [0] : vector<8x128xf32> to vector<128xf32>
    %42 = vector.shape_cast %41 : vector<128xf32> to vector<1x128xf32>
    %cst_23 = arith.constant 8.000000e+00 : f32
    %43 = vector.broadcast %cst_23 : f32 to vector<1x128xf32>
    %44 = arith.divf %42, %43 : vector<1x128xf32>
    %45 = vector.extract_strided_slice %31 {offsets = [0, 0], sizes = [1, 128], strides = [1, 1]} : vector<8x128xf32> to vector<1x128xf32>
    %cst_24 = arith.constant 9.99999974E-6 : f32
    %46 = vector.broadcast %cst_24 : f32 to vector<1x128xf32>
    %47 = arith.addf %44, %46 : vector<1x128xf32>
    %48 = math.rsqrt %47 : vector<1x128xf32>
    %49 = arith.mulf %45, %48 : vector<1x128xf32>
    %50 = vector.broadcast %49 : vector<1x128xf32> to vector<8x128xf32>
    %51 = arith.mulf %39, %50 : vector<8x128xf32>
    %52 = vector.extract_strided_slice %31 {offsets = [1, 0], sizes = [1, 128], strides = [1, 1]} : vector<8x128xf32> to vector<1x128xf32>
    %53 = vector.broadcast %52 : vector<1x128xf32> to vector<8x128xf32>
    %54 = arith.addf %51, %53 : vector<8x128xf32>
    %cst_25 = arith.constant 0.000000e+00 : f32
    %55 = vector.broadcast %cst_25 : f32 to vector<8x128xf32>
    %56 = arith.maximumf %54, %55 : vector<8x128xf32>
    %c0_26 = arith.constant 0 : index
    %c0_27 = arith.constant 0 : index
    %57 = vector.load %arg3[%c0_26, %c0_27] : memref<8x384xf32, #tpu.memory_space<vmem>>, vector<8x128xf32>
    tpu.vector_store %arg3[%c0_26, %c0_27], %56 {strides = array<i32>} : memref<8x384xf32, #tpu.memory_space<vmem>>, vector<8x128xf32>,
    %c400 = arith.constant 400 : index
    %c0_28 = arith.constant 0 : index
    %58 = vector.load %arg1[%c400, %c0_28] : memref<792x128xf32, #tpu.memory_space<vmem>>, vector<384x128xf32>
    %c784 = arith.constant 784 : index
    %c0_29 = arith.constant 0 : index
    %59 = vector.load %arg1[%c784, %c0_29] : memref<792x128xf32, #tpu.memory_space<vmem>>, vector<8x128xf32>
    %c0_30 = arith.constant 0 : index
    %c0_31 = arith.constant 0 : index
    %60 = vector.load %arg3[%c0_30, %c0_31] : memref<8x384xf32, #tpu.memory_space<vmem>>, vector<8x384xf32>
    %cst_32 = arith.constant dense<0.000000e+00> : vector<8x128xf32>
    %61 = tpu.matmul %60, %58, %cst_32 {dimension_numbers = #tpu.dot_dimension_numbers<[1], [0], [0], [1], [0, 0, 1, 1], [], []>} : vector<8x384xf32>, vector<384x128xf32>, vector<8x128xf32> -> vector<8x128xf32>
    %62 = vector.extract_strided_slice %59 {offsets = [0, 0], sizes = [1, 128], strides = [1, 1]} : vector<8x128xf32> to vector<1x128xf32>
    %63 = vector.broadcast %62 : vector<1x128xf32> to vector<8x128xf32>
    %64 = arith.addf %61, %63 : vector<8x128xf32>
    %c0_33 = arith.constant 0 : index
    %c0_34 = arith.constant 0 : index
    %65 = vector.load %arg2[%c0_33, %c0_34] : memref<8x128xf32, #tpu.memory_space<vmem>>, vector<8x128xf32>
    tpu.vector_store %arg2[%c0_33, %c0_34], %64 {strides = array<i32>} : memref<8x128xf32, #tpu.memory_space<vmem>>, vector<8x128xf32>,
    return
  }
}

</mosaic_0001>

<llo_original>
// kernel: tpu_custom_call.1
$region0: #{tpu_custom_call.1}
  #allocation0 [shape = 'u32[]', space=smem, size = 0x4, offset = 0x4, fixed_abs, tag = 'smem constant byte address 0x4 - core index']
  #allocation1 [shape = 'u32[144,128]{1,0:T(1,128)}', space=vmem, size = 0x12000, scoped, tag = 'internal scratch']
  #allocation2 [shape = 'f32[8,384]{1,0:T(8,128)}', space=vmem, size = 0x3000, scoped, tag = 'scratch operand']
  %s0 = inlined_call_operand.hbm [shape: f32[8,128], index: 0, kind: input, shape index: {}]
  %s1 = inlined_call_operand.hbm [shape: f32[792,128], index: 1, kind: input, shape index: {}]
  %s2 = inlined_call_operand.hbm [shape: f32[8,128], index: 2, kind: output, shape index: {}]
  %s3 = sld [smem:[#allocation0]]
  $region26: #{tpu_custom_call.1} parent=0
    _
  %s5 = ssub.s32 1, %s3
  %s6 = scalar_select 0, %s5, %s3
  $region1: #{tpu_custom_call.1} parent=0
    #allocation3 [shape = 'u8[4096]{0}', space=vmem, size = 0x1000, scoped, tag = 'input window, operand 0, single buffered']
    #allocation4 [shape = 's32[1]{0}', space=sflag, size = 0x4, scoped, tag = 'scoped memory for tpu_custom_call.1']
    #allocation5 [shape = 's32[1]{0}', space=sflag, size = 0x4, scoped, tag = 'scoped memory for tpu_custom_call.1']
    #allocation6 [shape = 'u8[405504]{0}', space=vmem, size = 0x63000, scoped, tag = 'input window, operand 1, single buffered']
    #allocation7 [shape = 's32[1]{0}', space=sflag, size = 0x4, scoped, tag = 'scoped memory for tpu_custom_call.1']
    #allocation8 [shape = 'u8[4096]{0}', space=vmem, size = 0x1000, scoped, tag = 'output window, operand 0, single buffered']
    %7 = vsyncpa [#allocation4], 0
    %8 = vsyncpa [#allocation7], 0
    %9 = vsyncpa [#allocation5], 0
    // Predicated region
    $region2: #{tpu_custom_call.1} parent=1 // pred_check
      _
    $region3: #{tpu_custom_call.1} parent=1 // pred_check_branch
      %11 = sbr.rel (0) target = $region5
    $region4: #{tpu_custom_call.1} parent=1 // pred_region
      %s13 = ssub.s32 128, 128
      %14 = vsyncadd [#allocation4], %s13
      %s16 = sshll.u32 [#allocation3], 4
      %s17 = int_to_ptr.vmem [resolvable:$true] %s16
      %19 = dma.hbm_to_vmem [thread:$0]  %s0, 128, %s17, [#allocation4]
    $region5: #{tpu_custom_call.1} parent=1 // pred_fallthru
      _
    // Predicated region
    $region6: #{tpu_custom_call.1} parent=1 // pred_check
      _
    $region7: #{tpu_custom_call.1} parent=1 // pred_check_branch
      %21 = sbr.rel (0) target = $region9
    $region8: #{tpu_custom_call.1} parent=1 // pred_region
      %s23 = ssub.s32 12672, 12672
      %24 = vsyncadd [#allocation7], %s23
      %s25 = sshll.u32 [#allocation6], 4
      %s26 = int_to_ptr.vmem [resolvable:$true] %s25
      %31 = dma.hbm_to_vmem [thread:$0]  %s1, 12672, %s26, [#allocation7], 128, 128, 8
    $region9: #{tpu_custom_call.1} parent=1 // pred_fallthru
      _
    // Predicated region
    $region10: #{tpu_custom_call.1} parent=1 // pred_check
      _
    $region11: #{tpu_custom_call.1} parent=1 // pred_check_branch
      %33 = sbr.rel (0) target = $region13
    $region12: #{tpu_custom_call.1} parent=1 // pred_region
      %34 = dma.done [#allocation4], 128
    $region13: #{tpu_custom_call.1} parent=1 // pred_fallthru
      _
    // Predicated region
    $region14: #{tpu_custom_call.1} parent=1 // pred_check
      _
    $region15: #{tpu_custom_call.1} parent=1 // pred_check_branch
      %36 = sbr.rel (0) target = $region17
    $region16: #{tpu_custom_call.1} parent=1 // pred_region
      %37 = dma.done [#allocation7], 12672
    $region17: #{tpu_custom_call.1} parent=1 // pred_fallthru
      _
    %v38 = vld [vmem:[#allocation3] sm:$0xff]
    %39 = vst [vmem:[#allocation2 + $0x10] sm:$0xff] %v38
    %v40 = vld [vmem:[#allocation6] sm:$0xff]
    %v41 = vld [vmem:[#allocation6 + $0x8] sm:$0xff]
    %v42 = vld [vmem:[#allocation6 + $0x10] sm:$0xff]
    %v43 = vld [vmem:[#allocation6 + $0x18] sm:$0xff]
    %v44 = vld [vmem:[#allocation6 + $0x20] sm:$0xff]
    %v45 = vld [vmem:[#allocation6 + $0x28] sm:$0xff]
    %v46 = vld [vmem:[#allocation6 + $0x30] sm:$0xff]
    %v47 = vld [vmem:[#allocation6 + $0x38] sm:$0xff]
    %v48 = vld [vmem:[#allocation6 + $0x40] sm:$0xff]
    %v49 = vld [vmem:[#allocation6 + $0x48] sm:$0xff]
    %v50 = vld [vmem:[#allocation6 + $0x50] sm:$0xff]
    %v51 = vld [vmem:[#allocation6 + $0x58] sm:$0xff]
    %v52 = vld [vmem:[#allocation6 + $0x60] sm:$0xff]
    %v53 = vld [vmem:[#allocation6 + $0x68] sm:$0xff]
    %v54 = vld [vmem:[#allocation6 + $0x70] sm:$0xff]
    %v55 = vld [vmem:[#allocation6 + $0x78] sm:$0xff]
    %v56 = vld [vmem:[#allocation6 + $0x80] sm:$0xff]
    %v57 = vld [vmem:[#allocation2 + $0x10] sm:$0xff]
    %58 = vmatprep.subr.mxu0 0.0
    %59 = vmatpush1.msra.mxu0 %v55
    %60 = vmatprep.subr.mxu0 0.0
    %61 = vmatpush1.msra.mxu0 %v54
    %62 = vmatprep.subr.mxu0 0.0
    %63 = vmatpush1.msra.mxu0 %v53
    %64 = vmatprep.subr.mxu0 0.0
    %65 = vmatpush1.msra.mxu0 %v52
    %66 = vmatprep.subr.mxu0 0.0
    %67 = vmatpush1.msra.mxu0 %v51
    %68 = vmatprep.subr.mxu0 0.0
    %69 = vmatpush1.msra.mxu0 %v50
    %70 = vmatprep.subr.mxu0 0.0
    %71 = vmatpush1.msra.mxu0 %v49
    %72 = vmatprep.subr.mxu0 0.0
    %73 = vmatpush1.msra.mxu0 %v48
    %74 = vmatprep.subr.mxu0 0.0
    %75 = vmatpush1.msra.mxu0 %v47
    %76 = vmatprep.subr.mxu0 0.0
    %77 = vmatpush1.msra.mxu0 %v46
    %78 = vmatprep.subr.mxu0 0.0
    %79 = vmatpush1.msra.mxu0 %v45
    %80 = vmatprep.subr.mxu0 0.0
    %81 = vmatpush1.msra.mxu0 %v44
    %82 = vmatprep.subr.mxu0 0.0
    %83 = vmatpush1.msra.mxu0 %v43
    %84 = vmatprep.subr.mxu0 0.0
    %85 = vmatpush1.msra.mxu0 %v42
    %86 = vmatprep.subr.mxu0 0.0
    %87 = vmatpush1.msra.mxu0 %v41
    %88 = vmatprep.subr.mxu0 0.0
    %89 = vmatpush1.msra.mxu0 %v40
    %90 = vmatprep.subr.mxu0 0.0
    %91 = vmatpush2.msra.mxu0 0.0
    %92 = vmatprep.subr.mxu0 0.0
    %93 = vmatpush2.msra.mxu0 0.0
    %94 = vmatprep.subr.mxu0 0.0
    %95 = vmatpush2.msra.mxu0 0.0
    %96 = vmatprep.subr.mxu0 0.0
    %97 = vmatpush2.msra.mxu0 0.0
    %98 = vmatprep.subr.mxu0 0.0
    %99 = vmatpush2.msra.mxu0 0.0
    %100 = vmatprep.subr.mxu0 0.0
    %101 = vmatpush2.msra.mxu0 0.0
    %102 = vmatprep.subr.mxu0 0.0
    %103 = vmatpush2.msra.mxu0 0.0
    %104 = vmatprep.subr.mxu0 0.0
    %105 = vmatpush2.msra.mxu0 0.0
    %106 = vmatprep.subr.mxu0 0.0
    %107 = vmatpush2.msra.mxu0 0.0
    %108 = vmatprep.subr.mxu0 0.0
    %109 = vmatpush2.msra.mxu0 0.0
    %110 = vmatprep.subr.mxu0 0.0
    %111 = vmatpush2.msra.mxu0 0.0
    %112 = vmatprep.subr.mxu0 0.0
    %113 = vmatpush2.msra.mxu0 0.0
    %114 = vmatprep.subr.mxu0 0.0
    %115 = vmatpush2.msra.mxu0 0.0
    %116 = vmatprep.subr.mxu0 0.0
    %117 = vmatpush2.msra.mxu0 0.0
    %118 = vmatprep.subr.mxu0 0.0
    %119 = vmatpush2.msra.mxu0 0.0
    %120 = vmatprep.subr.mxu0 0.0
    %121 = vmatpush2.msra.mxu0 0.0
    %122 = vmatprep.mubr.f32.mxu0 0.0
    %123 = vmatmul.mubr.f32.gmra.mxu0 %v57
    %v124 = vpop.f32.mrf.mxu0
    %v125 = vadd.f32 0.0, %v124
    %v126 = vpop.f32.mrf.mxu0
    %127 = vdwg.mxu0
    %v128 = vrot.slane %v125, 4
    %v129 = vadd.f32 %v125, %v128
    %v130 = vrot.slane %v129, 2
    %v131 = vadd.f32 %v129, %v130
    %v132 = vrot.slane %v131, 1
    %v133 = vadd.f32 %v131, %v132
    %v134 = vrcp.pop 8.0
    %v135 = vmul.f32 %v133, %v134
    %v136 = vsub.f32 %v125, %v135
    %v137 = vmul.f32 %v136, %v136
    %v138 = vrot.slane %v137, 4
    %v139 = vadd.f32 %v137, %v138
    %v140 = vrot.slane %v139, 2
    %v141 = vadd.f32 %v139, %v140
    %v142 = vrot.slane %v141, 1
    %v143 = vadd.f32 %v141, %v142
    %v144 = vmul.f32 %v143, %v134
    %v145 = vadd.f32 %v144, 1e-05
    %v146 = vrsqrt.pop %v145
    %v147 = vmul.f32 %v56, %v146
    %v148 = vlaneseq
    %v149 = vshrl.u32 %v148, 7
    %v150 = vsub.s32 0, %v149
    %v151 = vrot.slane %v147, %v150
    %v152 = vmul.f32 %v136, %v151
    %v153 = vlaneseq
    %v154 = vshrl.u32 %v153, 7
    %v155 = vsub.s32 1, %v154
    %v156 = vrot.slane %v56, %v155
    %v157 = vadd.f32 %v152, %v156
    %v158 = vmax.f32 %v157, 0.0
    %159 = vst [vmem:[#allocation2 + $0x8] sm:$0xff] %v158
    %v160 = vld [vmem:[#allocation6 + $0x88] sm:$0xff]
    %v161 = vld [vmem:[#allocation6 + $0x90] sm:$0xff]
    %v162 = vld [vmem:[#allocation6 + $0x98] sm:$0xff]
    %v163 = vld [vmem:[#allocation6 + $0xa0] sm:$0xff]
    %v164 = vld [vmem:[#allocation6 + $0xa8] sm:$0xff]
    %v165 = vld [vmem:[#allocation6 + $0xb0] sm:$0xff]
    %v166 = vld [vmem:[#allocation6 + $0xb8] sm:$0xff]
    %v167 = vld [vmem:[#allocation6 + $0xc0] sm:$0xff]
    %v168 = vld [vmem:[#allocation6 + $0xc8] sm:$0xff]
    %v169 = vld [vmem:[#allocation6 + $0xd0] sm:$0xff]
    %v170 = vld [vmem:[#allocation6 + $0xd8] sm:$0xff]
    %v171 = vld [vmem:[#allocation6 + $0xe0] sm:$0xff]
    %v172 = vld [vmem:[#allocation6 + $0xe8] sm:$0xff]
    %v173 = vld [vmem:[#allocation6 + $0xf0] sm:$0xff]
    %v174 = vld [vmem:[#allocation6 + $0xf8] sm:$0xff]
    %v175 = vld [vmem:[#allocation6 + $0x100] sm:$0xff]
    %v176 = vld [vmem:[#allocation6 + $0x108] sm:$0xff]
    %v177 = vld [vmem:[#allocation6 + $0x110] sm:$0xff]
    %v178 = vld [vmem:[#allocation6 + $0x118] sm:$0xff]
    %v179 = vld [vmem:[#allocation6 + $0x120] sm:$0xff]
    %v180 = vld [vmem:[#allocation6 + $0x128] sm:$0xff]
    %v181 = vld [vmem:[#allocation6 + $0x130] sm:$0xff]
    %v182 = vld [vmem:[#allocation6 + $0x138] sm:$0xff]
    %v183 = vld [vmem:[#allocation6 + $0x140] sm:$0xff]
    %v184 = vld [vmem:[#allocation6 + $0x148] sm:$0xff]
    %v185 = vld [vmem:[#allocation6 + $0x150] sm:$0xff]
    %v186 = vld [vmem:[#allocation6 + $0x158] sm:$0xff]
    %v187 = vld [vmem:[#allocation6 + $0x160] sm:$0xff]
    %v188 = vld [vmem:[#allocation6 + $0x168] sm:$0xff]
    %v189 = vld [vmem:[#allocation6 + $0x170] sm:$0xff]
    %v190 = vld [vmem:[#allocation6 + $0x178] sm:$0xff]
    %v191 = vld [vmem:[#allocation6 + $0x180] sm:$0xff]
    %v192 = vld [vmem:[#allocation6 + $0x188] sm:$0xff]
    %v193 = vld [vmem:[#allocation2 + $0x8] sm:$0xff]
    %v194 = vld [vmem:[#allocation2 + $0x10] sm:$0xff]
    %195 = vmatprep.subr.mxu0 0.0
    %196 = vmatpush1.msra.mxu0 %v175
    %197 = vmatprep.subr.mxu0 0.0
    %198 = vmatpush1.msra.mxu0 %v174
    %199 = vmatprep.subr.mxu0 0.0
    %200 = vmatpush1.msra.mxu0 %v173
    %201 = vmatprep.subr.mxu0 0.0
    %202 = vmatpush1.msra.mxu0 %v172
    %203 = vmatprep.subr.mxu0 0.0
    %204 = vmatpush1.msra.mxu0 %v171
    %205 = vmatprep.subr.mxu0 0.0
    %206 = vmatpush1.msra.mxu0 %v170
    %207 = vmatprep.subr.mxu0 0.0
    %208 = vmatpush1.msra.mxu0 %v169
    %209 = vmatprep.subr.mxu0 0.0
    %210 = vmatpush1.msra.mxu0 %v168
    %211 = vmatprep.subr.mxu0 0.0
    %212 = vmatpush1.msra.mxu0 %v167
    %213 = vmatprep.subr.mxu0 0.0
    %214 = vmatpush1.msra.mxu0 %v166
    %215 = vmatprep.subr.mxu0 0.0
    %216 = vmatpush1.msra.mxu0 %v165
    %217 = vmatprep.subr.mxu0 0.0
    %218 = vmatpush1.msra.mxu0 %v164
    %219 = vmatprep.subr.mxu0 0.0
    %220 = vmatpush1.msra.mxu0 %v163
    %221 = vmatprep.subr.mxu0 0.0
    %222 = vmatpush1.msra.mxu0 %v162
    %223 = vmatprep.subr.mxu0 0.0
    %224 = vmatpush1.msra.mxu0 %v161
    %225 = vmatprep.subr.mxu0 0.0
    %226 = vmatpush1.msra.mxu0 %v160
    %227 = vmatprep.subr.mxu0 0.0
    %228 = vmatpush2.msra.mxu0 %v191
    %229 = vmatprep.subr.mxu0 0.0
    %230 = vmatpush2.msra.mxu0 %v190
    %231 = vmatprep.subr.mxu0 0.0
    %232 = vmatpush2.msra.mxu0 %v189
    %233 = vmatprep.subr.mxu0 0.0
    %234 = vmatpush2.msra.mxu0 %v188
    %235 = vmatprep.subr.mxu0 0.0
    %236 = vmatpush2.msra.mxu0 %v187
    %237 = vmatprep.subr.mxu0 0.0
    %238 = vmatpush2.msra.mxu0 %v186
    %239 = vmatprep.subr.mxu0 0.0
    %240 = vmatpush2.msra.mxu0 %v185
    %241 = vmatprep.subr.mxu0 0.0
    %242 = vmatpush2.msra.mxu0 %v184
    %243 = vmatprep.subr.mxu0 0.0
    %244 = vmatpush2.msra.mxu0 %v183
    %245 = vmatprep.subr.mxu0 0.0
    %246 = vmatpush2.msra.mxu0 %v182
    %247 = vmatprep.subr.mxu0 0.0
    %248 = vmatpush2.msra.mxu0 %v181
    %249 = vmatprep.subr.mxu0 0.0
    %250 = vmatpush2.msra.mxu0 %v180
    %251 = vmatprep.subr.mxu0 0.0
    %252 = vmatpush2.msra.mxu0 %v179
    %253 = vmatprep.subr.mxu0 0.0
    %254 = vmatpush2.msra.mxu0 %v178
    %255 = vmatprep.subr.mxu0 0.0
    %256 = vmatpush2.msra.mxu0 %v177
    %257 = vmatprep.subr.mxu0 0.0
    %258 = vmatpush2.msra.mxu0 %v176
    %259 = vmatprep.mubr.f32.mxu0 %v194
    %260 = vmatmul.mubr.f32.gmra.mxu0 %v193
    %v261 = vpop.f32.mrf.mxu0
    %v262 = vadd.f32 0.0, %v261
    %v263 = vpop.f32.mrf.mxu0
    %264 = vdwg.mxu0
    %v265 = vrot.slane %v262, 4
    %v266 = vadd.f32 %v262, %v265
    %v267 = vrot.slane %v266, 2
    %v268 = vadd.f32 %v266, %v267
    %v269 = vrot.slane %v268, 1
    %v270 = vadd.f32 %v268, %v269
    %v271 = vmul.f32 %v270, %v134
    %v272 = vsub.f32 %v262, %v271
    %v273 = vmul.f32 %v272, %v272
    %v274 = vrot.slane %v273, 4
    %v275 = vadd.f32 %v273, %v274
    %v276 = vrot.slane %v275, 2
    %v277 = vadd.f32 %v275, %v276
    %v278 = vrot.slane %v277, 1
    %v279 = vadd.f32 %v277, %v278
    %v280 = vmul.f32 %v279, %v134
    %v281 = vadd.f32 %v280, 1e-05
    %v282 = vrsqrt.pop %v281
    %v283 = vmul.f32 %v192, %v282
    %v284 = vlaneseq
    %v285 = vshrl.u32 %v284, 7
    %v286 = vsub.s32 0, %v285
    %v287 = vrot.slane %v283, %v286
    %v288 = vmul.f32 %v272, %v287
    %v289 = vlaneseq
    %v290 = vshrl.u32 %v289, 7
    %v291 = vsub.s32 1, %v290
    %v292 = vrot.slane %v192, %v291
    %v293 = vadd.f32 %v288, %v292
    %v294 = vmax.f32 %v293, 0.0
    %295 = vst [vmem:[#allocation2] sm:$0xff] %v294
    %v296 = vld [vmem:[#allocation6 + $0x190] sm:$0xff]
    %v297 = vld [vmem:[#allocation6 + $0x198] sm:$0xff]
    %v298 = vld [vmem:[#allocation6 + $0x1a0] sm:$0xff]
    %v299 = vld [vmem:[#allocation6 + $0x1a8] sm:$0xff]
    %v300 = vld [vmem:[#allocation6 + $0x1b0] sm:$0xff]
    %v301 = vld [vmem:[#allocation6 + $0x1b8] sm:$0xff]
    %v302 = vld [vmem:[#allocation6 + $0x1c0] sm:$0xff]
    %v303 = vld [vmem:[#allocation6 + $0x1c8] sm:$0xff]
    %v304 = vld [vmem:[#allocation6 + $0x1d0] sm:$0xff]
    %v305 = vld [vmem:[#allocation6 + $0x1d8] sm:$0xff]
    %v306 = vld [vmem:[#allocation6 + $0x1e0] sm:$0xff]
    %v307 = vld [vmem:[#allocation6 + $0x1e8] sm:$0xff]
    %v308 = vld [vmem:[#allocation6 + $0x1f0] sm:$0xff]
    %v309 = vld [vmem:[#allocation6 + $0x1f8] sm:$0xff]
    %v310 = vld [vmem:[#allocation6 + $0x200] sm:$0xff]
    %v311 = vld [vmem:[#allocation6 + $0x208] sm:$0xff]
    %v312 = vld [vmem:[#allocation6 + $0x210] sm:$0xff]
    %v313 = vld [vmem:[#allocation6 + $0x218] sm:$0xff]
    %v314 = vld [vmem:[#allocation6 + $0x220] sm:$0xff]
    %v315 = vld [vmem:[#allocation6 + $0x228] sm:$0xff]
    %v316 = vld [vmem:[#allocation6 + $0x230] sm:$0xff]
    %v317 = vld [vmem:[#allocation6 + $0x238] sm:$0xff]
    %v318 = vld [vmem:[#allocation6 + $0x240] sm:$0xff]
    %v319 = vld [vmem:[#allocation6 + $0x248] sm:$0xff]
    %v320 = vld [vmem:[#allocation6 + $0x250] sm:$0xff]
    %v321 = vld [vmem:[#allocation6 + $0x258] sm:$0xff]
    %v322 = vld [vmem:[#allocation6 + $0x260] sm:$0xff]
    %v323 = vld [vmem:[#allocation6 + $0x268] sm:$0xff]
    %v324 = vld [vmem:[#allocation6 + $0x270] sm:$0xff]
    %v325 = vld [vmem:[#allocation6 + $0x278] sm:$0xff]
    %v326 = vld [vmem:[#allocation6 + $0x280] sm:$0xff]
    %v327 = vld [vmem:[#allocation6 + $0x288] sm:$0xff]
    %v328 = vld [vmem:[#allocation6 + $0x290] sm:$0xff]
    %v329 = vld [vmem:[#allocation6 + $0x298] sm:$0xff]
    %v330 = vld [vmem:[#allocation6 + $0x2a0] sm:$0xff]
    %v331 = vld [vmem:[#allocation6 + $0x2a8] sm:$0xff]
    %v332 = vld [vmem:[#allocation6 + $0x2b0] sm:$0xff]
    %v333 = vld [vmem:[#allocation6 + $0x2b8] sm:$0xff]
    %v334 = vld [vmem:[#allocation6 + $0x2c0] sm:$0xff]
    %v335 = vld [vmem:[#allocation6 + $0x2c8] sm:$0xff]
    %v336 = vld [vmem:[#allocation6 + $0x2d0] sm:$0xff]
    %v337 = vld [vmem:[#allocation6 + $0x2d8] sm:$0xff]
    %v338 = vld [vmem:[#allocation6 + $0x2e0] sm:$0xff]
    %v339 = vld [vmem:[#allocation6 + $0x2e8] sm:$0xff]
    %v340 = vld [vmem:[#allocation6 + $0x2f0] sm:$0xff]
    %v341 = vld [vmem:[#allocation6 + $0x2f8] sm:$0xff]
    %v342 = vld [vmem:[#allocation6 + $0x300] sm:$0xff]
    %v343 = vld [vmem:[#allocation6 + $0x308] sm:$0xff]
    %v344 = vld [vmem:[#allocation6 + $0x310] sm:$0xff]
    %v345 = vld [vmem:[#allocation2] sm:$0xff]
    %v346 = vld [vmem:[#allocation2 + $0x8] sm:$0xff]
    %v347 = vld [vmem:[#allocation2 + $0x10] sm:$0xff]
    %v348 = vlaneseq
    %v349 = vshrl.u32 %v348, 7
    %v350 = vsub.s32 0, %v349
    %v351 = vrot.slane %v344, %v350
    %352 = vmatprep.subr.mxu0 0.0
    %353 = vmatpush1.msra.mxu0 %v311
    %354 = vmatprep.subr.mxu0 0.0
    %355 = vmatpush1.msra.mxu0 %v310
    %356 = vmatprep.subr.mxu0 0.0
    %357 = vmatpush1.msra.mxu0 %v309
    %358 = vmatprep.subr.mxu0 0.0
    %359 = vmatpush1.msra.mxu0 %v308
    %360 = vmatprep.subr.mxu0 0.0
    %361 = vmatpush1.msra.mxu0 %v307
    %362 = vmatprep.subr.mxu0 0.0
    %363 = vmatpush1.msra.mxu0 %v306
    %364 = vmatprep.subr.mxu0 0.0
    %365 = vmatpush1.msra.mxu0 %v305
    %366 = vmatprep.subr.mxu0 0.0
    %367 = vmatpush1.msra.mxu0 %v304
    %368 = vmatprep.subr.mxu0 0.0
    %369 = vmatpush1.msra.mxu0 %v303
    %370 = vmatprep.subr.mxu0 0.0
    %371 = vmatpush1.msra.mxu0 %v302
    %372 = vmatprep.subr.mxu0 0.0
    %373 = vmatpush1.msra.mxu0 %v301
    %374 = vmatprep.subr.mxu0 0.0
    %375 = vmatpush1.msra.mxu0 %v300
    %376 = vmatprep.subr.mxu0 0.0
    %377 = vmatpush1.msra.mxu0 %v299
    %378 = vmatprep.subr.mxu0 0.0
    %379 = vmatpush1.msra.mxu0 %v298
    %380 = vmatprep.subr.mxu0 0.0
    %381 = vmatpush1.msra.mxu0 %v297
    %382 = vmatprep.subr.mxu0 0.0
    %383 = vmatpush1.msra.mxu0 %v296
    %384 = vmatprep.subr.mxu0 0.0
    %385 = vmatpush2.msra.mxu0 %v327
    %386 = vmatprep.subr.mxu0 0.0
    %387 = vmatpush2.msra.mxu0 %v326
    %388 = vmatprep.subr.mxu0 0.0
    %389 = vmatpush2.msra.mxu0 %v325
    %390 = vmatprep.subr.mxu0 0.0
    %391 = vmatpush2.msra.mxu0 %v324
    %392 = vmatprep.subr.mxu0 0.0
    %393 = vmatpush2.msra.mxu0 %v323
    %394 = vmatprep.subr.mxu0 0.0
    %395 = vmatpush2.msra.mxu0 %v322
    %396 = vmatprep.subr.mxu0 0.0
    %397 = vmatpush2.msra.mxu0 %v321
    %398 = vmatprep.subr.mxu0 0.0
    %399 = vmatpush2.msra.mxu0 %v320
    %400 = vmatprep.subr.mxu0 0.0
    %401 = vmatpush2.msra.mxu0 %v319
    %402 = vmatprep.subr.mxu0 0.0
    %403 = vmatpush2.msra.mxu0 %v318
    %404 = vmatprep.subr.mxu0 0.0
    %405 = vmatpush2.msra.mxu0 %v317
    %406 = vmatprep.subr.mxu0 0.0
    %407 = vmatpush2.msra.mxu0 %v316
    %408 = vmatprep.subr.mxu0 0.0
    %409 = vmatpush2.msra.mxu0 %v315
    %410 = vmatprep.subr.mxu0 0.0
    %411 = vmatpush2.msra.mxu0 %v314
    %412 = vmatprep.subr.mxu0 0.0
    %413 = vmatpush2.msra.mxu0 %v313
    %414 = vmatprep.subr.mxu0 0.0
    %415 = vmatpush2.msra.mxu0 %v312
    %416 = vmatprep.mubr.f32.mxu0 %v346
    %417 = vmatmul.mubr.f32.gmra.mxu0 %v345
    %v418 = vpop.f32.mrf.mxu0
    %v419 = vadd.f32 %v351, %v418
    %v420 = vpop.f32.mrf.mxu0
    %421 = vdwg.mxu0
    %422 = vmatprep.subr.mxu0 0.0
    %423 = vmatpush1.msra.mxu0 %v343
    %424 = vmatprep.subr.mxu0 0.0
    %425 = vmatpush1.msra.mxu0 %v342
    %426 = vmatprep.subr.mxu0 0.0
    %427 = vmatpush1.msra.mxu0 %v341
    %428 = vmatprep.subr.mxu0 0.0
    %429 = vmatpush1.msra.mxu0 %v340
    %430 = vmatprep.subr.mxu0 0.0
    %431 = vmatpush1.msra.mxu0 %v339
    %432 = vmatprep.subr.mxu0 0.0
    %433 = vmatpush1.msra.mxu0 %v338
    %434 = vmatprep.subr.mxu0 0.0
    %435 = vmatpush1.msra.mxu0 %v337
    %436 = vmatprep.subr.mxu0 0.0
    %437 = vmatpush1.msra.mxu0 %v336
    %438 = vmatprep.subr.mxu0 0.0
    %439 = vmatpush1.msra.mxu0 %v335
    %440 = vmatprep.subr.mxu0 0.0
    %441 = vmatpush1.msra.mxu0 %v334
    %442 = vmatprep.subr.mxu0 0.0
    %443 = vmatpush1.msra.mxu0 %v333
    %444 = vmatprep.subr.mxu0 0.0
    %445 = vmatpush1.msra.mxu0 %v332
    %446 = vmatprep.subr.mxu0 0.0
    %447 = vmatpush1.msra.mxu0 %v331
    %448 = vmatprep.subr.mxu0 0.0
    %449 = vmatpush1.msra.mxu0 %v330
    %450 = vmatprep.subr.mxu0 0.0
    %451 = vmatpush1.msra.mxu0 %v329
    %452 = vmatprep.subr.mxu0 0.0
    %453 = vmatpush1.msra.mxu0 %v328
    %454 = vmatprep.subr.mxu0 0.0
    %455 = vmatpush2.msra.mxu0 0.0
    %456 = vmatprep.subr.mxu0 0.0
    %457 = vmatpush2.msra.mxu0 0.0
    %458 = vmatprep.subr.mxu0 0.0
    %459 = vmatpush2.msra.mxu0 0.0
    %460 = vmatprep.subr.mxu0 0.0
    %461 = vmatpush2.msra.mxu0 0.0
    %462 = vmatprep.subr.mxu0 0.0
    %463 = vmatpush2.msra.mxu0 0.0
    %464 = vmatprep.subr.mxu0 0.0
    %465 = vmatpush2.msra.mxu0 0.0
    %466 = vmatprep.subr.mxu0 0.0
    %467 = vmatpush2.msra.mxu0 0.0
    %468 = vmatprep.subr.mxu0 0.0
    %469 = vmatpush2.msra.mxu0 0.0
    %470 = vmatprep.subr.mxu0 0.0
    %471 = vmatpush2.msra.mxu0 0.0
    %472 = vmatprep.subr.mxu0 0.0
    %473 = vmatpush2.msra.mxu0 0.0
    %474 = vmatprep.subr.mxu0 0.0
    %475 = vmatpush2.msra.mxu0 0.0
    %476 = vmatprep.subr.mxu0 0.0
    %477 = vmatpush2.msra.mxu0 0.0
    %478 = vmatprep.subr.mxu0 0.0
    %479 = vmatpush2.msra.mxu0 0.0
    %480 = vmatprep.subr.mxu0 0.0
    %481 = vmatpush2.msra.mxu0 0.0
    %482 = vmatprep.subr.mxu0 0.0
    %483 = vmatpush2.msra.mxu0 0.0
    %484 = vmatprep.subr.mxu0 0.0
    %485 = vmatpush2.msra.mxu0 0.0
    %486 = vmatprep.mubr.f32.mxu0 0.0
    %487 = vmatmul.mubr.f32.gmra.mxu0 %v347
    %v488 = vpop.f32.mrf.mxu0
    %v489 = vadd.f32 %v419, %v488
    %v490 = vpop.f32.mrf.mxu0
    %491 = vdwg.mxu0
    %492 = vst [vmem:[#allocation8] sm:$0xff] %v489
    // Predicated region
    $region18: #{tpu_custom_call.1} parent=1 // pred_check
      _
    $region19: #{tpu_custom_call.1} parent=1 // pred_check_branch
      %494 = sbr.rel (0) target = $region21
    $region20: #{tpu_custom_call.1} parent=1 // pred_region
      %s496 = ssub.s32 128, 128
      %497 = vsyncadd [#allocation5], %s496
      %s499 = sshll.u32 [#allocation8], 4
      %s500 = int_to_ptr.vmem [resolvable:$true] %s499
      %502 = dma.vmem_to_hbm [thread:$0]  %s500, 128, %s2, [#allocation5]
    $region21: #{tpu_custom_call.1} parent=1 // pred_fallthru
      _
    // Predicated region
    $region22: #{tpu_custom_call.1} parent=1 // pred_check
      _
    $region23: #{tpu_custom_call.1} parent=1 // pred_check_branch
      %504 = sbr.rel (0) target = $region25
    $region24: #{tpu_custom_call.1} parent=1 // pred_region
      %505 = dma.done [#allocation5], 128
    $region25: #{tpu_custom_call.1} parent=1 // pred_fallthru
      _
    %506 = vsyncpa [#allocation4], 1
    %507 = vsyncpa [#allocation7], 1
    %508 = vsyncpa [#allocation5], 1

</llo_original>
